<compile_context>
chip_gen: v5e
topology: v5e:2x2
jax: 0.10.0
libtpu: 0.0.40
codegen_flags: <defaults>
</compile_context>

<pallas_src>
import functools

import jax
import jax.numpy as jnp
from jax.experimental import pallas as pl
from jax.experimental.pallas import tpu as pltpu


def _round_up(v, m):
    return (v + m - 1) // m * m


def _rawnet_kernel(wh_ref, wx_ref, hb_ref, hh_ref, xb_ref, xh_ref, o_ref, *,
                   dilations):
    # wh_ref/wx_ref: (n_layers, 2) conv taps in SMEM (scalar reads only).
    # hb/xb: (1, R, C) body rows; hh/xh: (1, 8, C) continuation rows (the 8
    # rows immediately after the body in the same folded HBM array).
    h = jnp.concatenate([hb_ref[0], hh_ref[0]], axis=0)   # (R+8, C) f32
    x = jnp.concatenate([xb_ref[0], xh_ref[0]], axis=0)
    r_buf, n_lanes = h.shape
    col = jax.lax.broadcasted_iota(jnp.int32, (r_buf, n_lanes), 1)  # hoisted

    for k, d in enumerate(dilations):          # static, unrolled layer loop
        wh0 = wh_ref[k, 0]
        wh1 = wh_ref[k, 1]
        wx0 = wx_ref[k, 0]
        wx1 = wx_ref[k, 1]
        keep = col < (n_lanes - d)
        # shift-by-d along the flattened (row-major) time axis:
        #   same-row part   -> lane roll (XLU)
        #   row-crossing tail (last d columns) -> extra one-row sublane roll
        h_lane = pltpu.roll(h, n_lanes - d, axis=1)   # h[r, (c+d) % C]
        x_lane = pltpu.roll(x, n_lanes - d, axis=1)
        h_s = jnp.where(keep, h_lane, pltpu.roll(h_lane, r_buf - 1, axis=0))
        x_s = jnp.where(keep, x_lane, pltpu.roll(x_lane, r_buf - 1, axis=0))
        h = wh0 * h + wh1 * h_s                       # 2-tap dilated conv (VPU)
        x = jnp.tanh(h + (wx0 * x + wx1 * x_s))       # gate (EUP tanh)

    o_ref[0] = x[: o_ref.shape[1], :]                 # lane-dense store


def rawnet_forward(h, x, wh, wx, n_layers, *, block_elems=256 * 1024):
    """h, x: (B, 1, L) float32 (NCW, C == 1).  Returns (B, 1, L_out) f32."""
    B, Cch, L = h.shape
    assert Cch == 1 and x.shape == h.shape
    dilations = tuple(2 ** i for i in range(n_layers))
    halo = sum(dilations)                      # = 2**n_layers - 1
    L_out = L - halo
    assert L_out > 0

    LANE, SUB, HR = 128, 8, 8
    # Fold time row-major onto (rows, C lanes); halo <= C keeps every output's
    # dependency window inside its own row plus the next row.
    C = max(LANE, _round_up(halo, LANE))
    rows_needed = -(-L_out // C)                          # output rows
    target_rows = max(SUB, (block_elems // C) // SUB * SUB)
    R = min(target_rows, _round_up(rows_needed, SUB))     # body rows per step
    nc = -(-rows_needed // R)                             # time chunks
    Rtot = nc * R + HR                                    # + continuation rows
    Ltot = Rtot * C

    def prep(a):
        # (B,1,L) -> zero-pad -> contiguous (free) reshape to the time fold.
        a2 = jnp.pad(a[:, 0, :].astype(jnp.float32), ((0, 0), (0, Ltot - L)))
        return a2.reshape(B, Rtot, C)

    h2 = prep(h)
    x2 = prep(x)

    body_spec = pl.BlockSpec((1, R, C), lambda b, c: (b, c, 0))
    halo_spec = pl.BlockSpec((1, HR, C),
                             lambda b, c: (b, (c + 1) * (R // HR), 0))
    kernel = functools.partial(_rawnet_kernel, dilations=dilations)

    out = pl.pallas_call(
        kernel,
        out_shape=jax.ShapeDtypeStruct((B, nc * R, C), jnp.float32),
        grid=(B, nc),
        in_specs=[
            pl.BlockSpec(memory_space=pltpu.MemorySpace.SMEM),   # wh taps
            pl.BlockSpec(memory_space=pltpu.MemorySpace.SMEM),   # wx taps
            body_spec, halo_spec,                                # h (same array)
            body_spec, halo_spec,                                # x (same array)
        ],
        out_specs=pl.BlockSpec((1, R, C), lambda b, c: (b, c, 0)),
        compiler_params=pltpu.CompilerParams(
            dimension_semantics=("parallel", "parallel"),
            vmem_limit_bytes=32 * 1024 * 1024),
    )(wh.astype(jnp.float32), wx.astype(jnp.float32), h2, h2, x2, x2)

    # Folded output -> flat time (contiguous reshape) -> valid prefix.
    out = out.reshape(B, nc * R * C)[:, :L_out]
    return out[:, None, :]


def rawnet_reference(h, x, wh, wx, n_layers):
    """Pure-JAX reference mirroring the PyTorch forward exactly."""
    dilations = [2 ** i for i in range(n_layers)]
    h = h[:, 0, :]
    x = x[:, 0, :]
    for k, d in enumerate(dilations):
        Lc = h.shape[1]
        h = wh[k, 0] * h[:, : Lc - d] + wh[k, 1] * h[:, d:]
        x = jnp.tanh(h + (wx[k, 0] * x[:, : Lc - d] + wx[k, 1] * x[:, d:]))
    return x[:, None, :]


if __name__ == "__main__":
    # TODO(synk): RawStack._block's torch.cuda / DataParallel device plumbing is
    # host-side placement logic with no kernel equivalent; omitted.
    B, L, n_layers = 2, 300, 3   # dilations 1, 2, 4 -> L_out = 300 - 7 = 293

    key = jax.random.PRNGKey(0)
    kh, kx, kwh, kwx = jax.random.split(key, 4)
    h = jax.random.normal(kh, (B, 1, L), dtype=jnp.float32)
    x = jax.random.normal(kx, (B, 1, L), dtype=jnp.float32)
    # Per layer, Conv1d(1,1,2,bias=False) has 2 taps -> (n_layers, 2) each.
    wh = 0.5 * jax.random.normal(kwh, (n_layers, 2), dtype=jnp.float32)
    wx = 0.5 * jax.random.normal(kwx, (n_layers, 2), dtype=jnp.float32)

    out = jax.block_until_ready(rawnet_forward(h, x, wh, wx, n_layers))
    ref = rawnet_reference(h, x, wh, wx, n_layers)

    assert out.shape == ref.shape == (B, 1, L - (2 ** n_layers - 1)), out.shape
    err = float(jnp.max(jnp.abs(out - ref)))
    assert jnp.allclose(out, ref, atol=1e-4, rtol=1e-4), err
    print("KERNEL_OK")
</pallas_src>

<mosaic_0001>
module attributes {stable_mosaic.version = 11 : i64} {
  func.func @_rawnet_kernel(%arg0: i32, %arg1: i32, %arg2: memref<3x2xf32, #tpu.memory_space<smem>>, %arg3: memref<3x2xf32, #tpu.memory_space<smem>>, %arg4: memref<1x8x128xf32, #tpu.memory_space<vmem>>, %arg5: memref<1x8x128xf32, #tpu.memory_space<vmem>>, %arg6: memref<1x8x128xf32, #tpu.memory_space<vmem>>, %arg7: memref<1x8x128xf32, #tpu.memory_space<vmem>>, %arg8: memref<1x8x128xf32, #tpu.memory_space<vmem>>) attributes {dimension_semantics = [#tpu.dimension_semantics<parallel>, #tpu.dimension_semantics<parallel>], iteration_bounds = array<i64: 2, 1>, scalar_prefetch = 0 : i64, scratch_operands = 0 : i64, tpu.core_type = #tpu.core_type<tc>, window_params = [{transform_indices = @transform_0, window_bounds = array<i64: 3, 2>}, {transform_indices = @transform_1, window_bounds = array<i64: 3, 2>}, {transform_indices = @transform_2, window_bounds = array<i64: 1, 8, 128>}, {transform_indices = @transform_3, window_bounds = array<i64: 1, 8, 128>}, {transform_indices = @transform_4, window_bounds = array<i64: 1, 8, 128>}, {transform_indices = @transform_5, window_bounds = array<i64: 1, 8, 128>}, {transform_indices = @transform_6, window_bounds = array<i64: 1, 8, 128>}]} {
    %c0 = arith.constant 0 : index
    %c0_0 = arith.constant 0 : index
    %c0_1 = arith.constant 0 : index
    %0 = vector.load %arg4[%c0, %c0_0, %c0_1] : memref<1x8x128xf32, #tpu.memory_space<vmem>>, vector<1x8x128xf32>
    %1 = vector.shape_cast %0 : vector<1x8x128xf32> to vector<8x128xf32>
    %c0_2 = arith.constant 0 : index
    %c0_3 = arith.constant 0 : index
    %c0_4 = arith.constant 0 : index
    %2 = vector.load %arg5[%c0_2, %c0_3, %c0_4] : memref<1x8x128xf32, #tpu.memory_space<vmem>>, vector<1x8x128xf32>
    %3 = vector.shape_cast %2 : vector<1x8x128xf32> to vector<8x128xf32>
    %4 = tpu.concatenate %1, %3 in 0 : vector<8x128xf32>, vector<8x128xf32> -> vector<16x128xf32>
    %c0_5 = arith.constant 0 : index
    %c0_6 = arith.constant 0 : index
    %c0_7 = arith.constant 0 : index
    %5 = vector.load %arg6[%c0_5, %c0_6, %c0_7] : memref<1x8x128xf32, #tpu.memory_space<vmem>>, vector<1x8x128xf32>
    %6 = vector.shape_cast %5 : vector<1x8x128xf32> to vector<8x128xf32>
    %c0_8 = arith.constant 0 : index
    %c0_9 = arith.constant 0 : index
    %c0_10 = arith.constant 0 : index
    %7 = vector.load %arg7[%c0_8, %c0_9, %c0_10] : memref<1x8x128xf32, #tpu.memory_space<vmem>>, vector<1x8x128xf32>
    %8 = vector.shape_cast %7 : vector<1x8x128xf32> to vector<8x128xf32>
    %9 = tpu.concatenate %6, %8 in 0 : vector<8x128xf32>, vector<8x128xf32> -> vector<16x128xf32>
    %10 = tpu.iota {dimensions = array<i32: 1>} : vector<16x128xi32>
    %c0_11 = arith.constant 0 : index
    %c0_12 = arith.constant 0 : index
    %11 = memref.load %arg2[%c0_11, %c0_12] : memref<3x2xf32, #tpu.memory_space<smem>>
    %c0_13 = arith.constant 0 : index
    %c1 = arith.constant 1 : index
    %12 = memref.load %arg2[%c0_13, %c1] : memref<3x2xf32, #tpu.memory_space<smem>>
    %c0_14 = arith.constant 0 : index
    %c0_15 = arith.constant 0 : index
    %13 = memref.load %arg3[%c0_14, %c0_15] : memref<3x2xf32, #tpu.memory_space<smem>>
    %c0_16 = arith.constant 0 : index
    %c1_17 = arith.constant 1 : index
    %14 = memref.load %arg3[%c0_16, %c1_17] : memref<3x2xf32, #tpu.memory_space<smem>>
    %c127_i32 = arith.constant 127 : i32
    %15 = vector.broadcast %c127_i32 : i32 to vector<16x128xi32>
    %16 = arith.cmpi slt, %10, %15 : vector<16x128xi32>
    %c127_i32_18 = arith.constant 127 : i32
    %17 = tpu.dynamic_rotate %4 by %c127_i32_18 dim 1 : vector<16x128xf32>, i32 -> vector<16x128xf32>
    %c127_i32_19 = arith.constant 127 : i32
    %18 = tpu.dynamic_rotate %9 by %c127_i32_19 dim 1 : vector<16x128xf32>, i32 -> vector<16x128xf32>
    %c15_i32 = arith.constant 15 : i32
    %19 = tpu.dynamic_rotate %17 by %c15_i32 dim 0 : vector<16x128xf32>, i32 -> vector<16x128xf32>
    %20 = arith.select %16, %17, %19 : vector<16x128xi1>, vector<16x128xf32>
    %c15_i32_20 = arith.constant 15 : i32
    %21 = tpu.dynamic_rotate %18 by %c15_i32_20 dim 0 : vector<16x128xf32>, i32 -> vector<16x128xf32>
    %22 = arith.select %16, %18, %21 : vector<16x128xi1>, vector<16x128xf32>
    %23 = vector.broadcast %11 : f32 to vector<16x128xf32>
    %24 = arith.mulf %23, %4 : vector<16x128xf32>
    %25 = vector.broadcast %12 : f32 to vector<16x128xf32>
    %26 = arith.mulf %25, %20 : vector<16x128xf32>
    %27 = arith.addf %24, %26 : vector<16x128xf32>
    %28 = vector.broadcast %13 : f32 to vector<16x128xf32>
    %29 = arith.mulf %28, %9 : vector<16x128xf32>
    %30 = vector.broadcast %14 : f32 to vector<16x128xf32>
    %31 = arith.mulf %30, %22 : vector<16x128xf32>
    %32 = arith.addf %29, %31 : vector<16x128xf32>
    %33 = arith.addf %27, %32 : vector<16x128xf32>
    %34 = math.tanh %33 : vector<16x128xf32>
    %c1_21 = arith.constant 1 : index
    %c0_22 = arith.constant 0 : index
    %35 = memref.load %arg2[%c1_21, %c0_22] : memref<3x2xf32, #tpu.memory_space<smem>>
    %c1_23 = arith.constant 1 : index
    %c1_24 = arith.constant 1 : index
    %36 = memref.load %arg2[%c1_23, %c1_24] : memref<3x2xf32, #tpu.memory_space<smem>>
    %c1_25 = arith.constant 1 : index
    %c0_26 = arith.constant 0 : index
    %37 = memref.load %arg3[%c1_25, %c0_26] : memref<3x2xf32, #tpu.memory_space<smem>>
    %c1_27 = arith.constant 1 : index
    %c1_28 = arith.constant 1 : index
    %38 = memref.load %arg3[%c1_27, %c1_28] : memref<3x2xf32, #tpu.memory_space<smem>>
    %c126_i32 = arith.constant 126 : i32
    %39 = vector.broadcast %c126_i32 : i32 to vector<16x128xi32>
    %40 = arith.cmpi slt, %10, %39 : vector<16x128xi32>
    %c126_i32_29 = arith.constant 126 : i32
    %41 = tpu.dynamic_rotate %27 by %c126_i32_29 dim 1 : vector<16x128xf32>, i32 -> vector<16x128xf32>
    %c126_i32_30 = arith.constant 126 : i32
    %42 = tpu.dynamic_rotate %34 by %c126_i32_30 dim 1 : vector<16x128xf32>, i32 -> vector<16x128xf32>
    %c15_i32_31 = arith.constant 15 : i32
    %43 = tpu.dynamic_rotate %41 by %c15_i32_31 dim 0 : vector<16x128xf32>, i32 -> vector<16x128xf32>
    %44 = arith.select %40, %41, %43 : vector<16x128xi1>, vector<16x128xf32>
    %c15_i32_32 = arith.constant 15 : i32
    %45 = tpu.dynamic_rotate %42 by %c15_i32_32 dim 0 : vector<16x128xf32>, i32 -> vector<16x128xf32>
    %46 = arith.select %40, %42, %45 : vector<16x128xi1>, vector<16x128xf32>
    %47 = vector.broadcast %35 : f32 to vector<16x128xf32>
    %48 = arith.mulf %47, %27 : vector<16x128xf32>
    %49 = vector.broadcast %36 : f32 to vector<16x128xf32>
    %50 = arith.mulf %49, %44 : vector<16x128xf32>
    %51 = arith.addf %48, %50 : vector<16x128xf32>
    %52 = vector.broadcast %37 : f32 to vector<16x128xf32>
    %53 = arith.mulf %52, %34 : vector<16x128xf32>
    %54 = vector.broadcast %38 : f32 to vector<16x128xf32>
    %55 = arith.mulf %54, %46 : vector<16x128xf32>
    %56 = arith.addf %53, %55 : vector<16x128xf32>
    %57 = arith.addf %51, %56 : vector<16x128xf32>
    %58 = math.tanh %57 : vector<16x128xf32>
    %c2 = arith.constant 2 : index
    %c0_33 = arith.constant 0 : index
    %59 = memref.load %arg2[%c2, %c0_33] : memref<3x2xf32, #tpu.memory_space<smem>>
    %c2_34 = arith.constant 2 : index
    %c1_35 = arith.constant 1 : index
    %60 = memref.load %arg2[%c2_34, %c1_35] : memref<3x2xf32, #tpu.memory_space<smem>>
    %c2_36 = arith.constant 2 : index
    %c0_37 = arith.constant 0 : index
    %61 = memref.load %arg3[%c2_36, %c0_37] : memref<3x2xf32, #tpu.memory_space<smem>>
    %c2_38 = arith.constant 2 : index
    %c1_39 = arith.constant 1 : index
    %62 = memref.load %arg3[%c2_38, %c1_39] : memref<3x2xf32, #tpu.memory_space<smem>>
    %c124_i32 = arith.constant 124 : i32
    %63 = vector.broadcast %c124_i32 : i32 to vector<16x128xi32>
    %64 = arith.cmpi slt, %10, %63 : vector<16x128xi32>
    %c124_i32_40 = arith.constant 124 : i32
    %65 = tpu.dynamic_rotate %51 by %c124_i32_40 dim 1 : vector<16x128xf32>, i32 -> vector<16x128xf32>
    %c124_i32_41 = arith.constant 124 : i32
    %66 = tpu.dynamic_rotate %58 by %c124_i32_41 dim 1 : vector<16x128xf32>, i32 -> vector<16x128xf32>
    %c15_i32_42 = arith.constant 15 : i32
    %67 = tpu.dynamic_rotate %65 by %c15_i32_42 dim 0 : vector<16x128xf32>, i32 -> vector<16x128xf32>
    %68 = arith.select %64, %65, %67 : vector<16x128xi1>, vector<16x128xf32>
    %c15_i32_43 = arith.constant 15 : i32
    %69 = tpu.dynamic_rotate %66 by %c15_i32_43 dim 0 : vector<16x128xf32>, i32 -> vector<16x128xf32>
    %70 = arith.select %64, %66, %69 : vector<16x128xi1>, vector<16x128xf32>
    %71 = vector.broadcast %59 : f32 to vector<16x128xf32>
    %72 = arith.mulf %71, %51 : vector<16x128xf32>
    %73 = vector.broadcast %60 : f32 to vector<16x128xf32>
    %74 = arith.mulf %73, %68 : vector<16x128xf32>
    %75 = arith.addf %72, %74 : vector<16x128xf32>
    %76 = vector.broadcast %61 : f32 to vector<16x128xf32>
    %77 = arith.mulf %76, %58 : vector<16x128xf32>
    %78 = vector.broadcast %62 : f32 to vector<16x128xf32>
    %79 = arith.mulf %78, %70 : vector<16x128xf32>
    %80 = arith.addf %77, %79 : vector<16x128xf32>
    %81 = arith.addf %75, %80 : vector<16x128xf32>
    %82 = math.tanh %81 : vector<16x128xf32>
    %83 = vector.extract_strided_slice %82 {offsets = [0, 0], sizes = [8, 128], strides = [1, 1]} : vector<16x128xf32> to vector<8x128xf32>
    %c0_44 = arith.constant 0 : index
    %c0_45 = arith.constant 0 : index
    %c0_46 = arith.constant 0 : index
    %84 = vector.load %arg8[%c0_44, %c0_45, %c0_46] : memref<1x8x128xf32, #tpu.memory_space<vmem>>, vector<1x8x128xf32>
    %85 = vector.shape_cast %84 : vector<1x8x128xf32> to vector<8x128xf32>
    %86 = vector.shape_cast %83 : vector<8x128xf32> to vector<1x8x128xf32>
    tpu.vector_store %arg8[%c0_44, %c0_45, %c0_46], %86 {strides = array<i32>} : memref<1x8x128xf32, #tpu.memory_space<vmem>>, vector<1x8x128xf32>,
    return
  }
  func.func @transform_0(%arg0: i32, %arg1: i32) -> (i32, i32) {
    %c0_i32 = arith.constant 0 : i32
    %c0_i32_0 = arith.constant 0 : i32
    %c0_i32_1 = arith.constant 0 : i32
    return %c0_i32, %c0_i32_0 : i32, i32
  }
  func.func @transform_1(%arg0: i32, %arg1: i32) -> (i32, i32) {
    %c0_i32 = arith.constant 0 : i32
    %c0_i32_0 = arith.constant 0 : i32
    %c0_i32_1 = arith.constant 0 : i32
    return %c0_i32, %c0_i32_0 : i32, i32
  }
  func.func @transform_2(%arg0: i32, %arg1: i32) -> (i32, i32, i32) {
    %c0_i32 = arith.constant 0 : i32
    %c0_i32_0 = arith.constant 0 : i32
    return %arg0, %arg1, %c0_i32 : i32, i32, i32
  }
  func.func @transform_3(%arg0: i32, %arg1: i32) -> (i32, i32, i32) {
    %c1_i32 = arith.constant 1 : i32
    %0 = arith.addi %arg1, %c1_i32 : i32
    %c1_i32_0 = arith.constant 1 : i32
    %1 = arith.muli %0, %c1_i32_0 : i32
    %c0_i32 = arith.constant 0 : i32
    %c0_i32_1 = arith.constant 0 : i32
    return %arg0, %1, %c0_i32 : i32, i32, i32
  }
  func.func @transform_4(%arg0: i32, %arg1: i32) -> (i32, i32, i32) {
    %c0_i32 = arith.constant 0 : i32
    %c0_i32_0 = arith.constant 0 : i32
    return %arg0, %arg1, %c0_i32 : i32, i32, i32
  }
  func.func @transform_5(%arg0: i32, %arg1: i32) -> (i32, i32, i32) {
    %c1_i32 = arith.constant 1 : i32
    %0 = arith.addi %arg1, %c1_i32 : i32
    %c1_i32_0 = arith.constant 1 : i32
    %1 = arith.muli %0, %c1_i32_0 : i32
    %c0_i32 = arith.constant 0 : i32
    %c0_i32_1 = arith.constant 0 : i32
    return %arg0, %1, %c0_i32 : i32, i32, i32
  }
  func.func @transform_6(%arg0: i32, %arg1: i32) -> (i32, i32, i32) {
    %c0_i32 = arith.constant 0 : i32
    %c0_i32_0 = arith.constant 0 : i32
    return %arg0, %arg1, %c0_i32 : i32, i32, i32
  }
}

</mosaic_0001>

<llo_original>
// kernel: tpu_custom_call.1
$region0: #{tpu_custom_call.1}
  #allocation0 [shape = 'u32[]', space=smem, size = 0x4, offset = 0x4, fixed_abs, tag = 'smem constant byte address 0x4 - core index']
  #allocation1 [shape = 'u32[72,128]{1,0:T(1,128)}', space=vmem, size = 0x9000, scoped, tag = 'internal scratch']
  %s0 = inlined_call_operand.vmem [shape: f32[3,2], index: 0, kind: input, shape index: {}]
  %s1 = inlined_call_operand.vmem [shape: f32[3,2], index: 1, kind: input, shape index: {}]
  %s2 = inlined_call_operand.hbm [shape: f32[2,16,128], index: 2, kind: input, shape index: {}]
  %s3 = inlined_call_operand.hbm [shape: f32[2,16,128], index: 3, kind: input, shape index: {}]
  %s4 = inlined_call_operand.hbm [shape: f32[2,16,128], index: 4, kind: input, shape index: {}]
  %s5 = inlined_call_operand.hbm [shape: f32[2,16,128], index: 5, kind: input, shape index: {}]
  %s6 = inlined_call_operand.hbm [shape: f32[2,8,128], index: 6, kind: output, shape index: {}]
  %s7 = sld [smem:[#allocation0]]
  $region81: #{tpu_custom_call.1} parent=0
    _
  %s9 = ssub.s32 1, %s7
  %s10 = scalar_select 0, %s9, %s7
  $region1: #{tpu_custom_call.1} parent=0
    #allocation2 [shape = 'u8[2048]{0}', space=smem, size = 0x800, scoped, tag = 'input window, operand 0, single buffered']
    #allocation3 [shape = 's32[2]{0}', space=sflag, size = 0x8, scoped, tag = 'scoped memory for tpu_custom_call.1']
    #allocation4 [shape = 's32[2]{0}', space=sflag, size = 0x8, scoped, tag = 'scoped memory for tpu_custom_call.1']
    #allocation5 [shape = 's32[2]{0}', space=sflag, size = 0x8, scoped, tag = 'scoped memory for tpu_custom_call.1']
    #allocation6 [shape = 'u8[2048]{0}', space=smem, size = 0x800, scoped, tag = 'input window, operand 1, single buffered']
    #allocation7 [shape = 's32[1]{0}', space=sflag, size = 0x4, scoped, tag = 'scoped memory for tpu_custom_call.1']
    #allocation8 [shape = 'u8[8192]{0}', space=vmem, size = 0x2000, scoped, tag = 'input window, operand 2']
    #allocation9 [shape = 'u8[8192]{0}', space=vmem, size = 0x2000, scoped, tag = 'input window, operand 3']
    #allocation10 [shape = 's32[2]{0}', space=sflag, size = 0x8, scoped, tag = 'scoped memory for tpu_custom_call.1']
    #allocation11 [shape = 'u8[8192]{0}', space=vmem, size = 0x2000, scoped, tag = 'input window, operand 4']
    #allocation12 [shape = 'u8[8192]{0}', space=vmem, size = 0x2000, scoped, tag = 'input window, operand 5']
    #allocation13 [shape = 's32[2]{0}', space=sflag, size = 0x8, scoped, tag = 'scoped memory for tpu_custom_call.1']
    #allocation14 [shape = 'u8[8192]{0}', space=vmem, size = 0x2000, scoped, tag = 'output window, operand 0']
    %11 = vsyncpa [#allocation5], 0
    %12 = vsyncpa [#allocation7], 0
    %13 = vsyncpa [#allocation3], 0
    %s14 = scalar_lea.sflag [#allocation3], 1
    %15 = vsyncpa %s14, 0
    %16 = vsyncpa [#allocation10], 0
    %s17 = scalar_lea.sflag [#allocation10], 1
    %18 = vsyncpa %s17, 0
    %19 = vsyncpa [#allocation13], 0
    %s20 = scalar_lea.sflag [#allocation13], 1
    %21 = vsyncpa %s20, 0
    %22 = vsyncpa [#allocation4], 0
    %s23 = scalar_lea.sflag [#allocation4], 1
    %24 = vsyncpa %s23, 0
    loop: start=0, step=1, limit=4
    $region2: #{tpu_custom_call.1} parent=1 // loop_pre_header
      _
    $region3: #{tpu_custom_call.1} parent=1 // loop_header
      %s26 = sphi 0, %s30
      %p27 = scmp.ge.s32.totalorder %s26, 4
      %s33 = sphi 0, %s45
      %s34 = sphi 0, %s41
      %s35 = sphi 0, %s33
      %s36 = sphi 0, %s34
      %s37 = sphi 0, %s35
      %s38 = sphi 0, %s36
      %s46 = sphi 0, %s46
      %s48 = sphi 0, %s46
      %s49 = sphi 0, %s48
      %s63 = sphi 0, %s49
      %s67 = sphi 0, %s67
      %s69 = sphi 0, %s67
      %s70 = sphi 0, %s69
      %s84 = sphi 0, %s70
      %s92 = sphi 0, %s94
      %s95 = sphi 0, %s92
      %s96 = sphi 0, %s95
      %s112 = sphi 0, %s96
      %s122 = sphi 0, %s124
      %s125 = sphi 0, %s122
      %s126 = sphi 0, %s125
      %s142 = sphi 0, %s126
      %s150 = sphi 0, %s152
      %s153 = sphi 0, %s150
      %s154 = sphi 0, %s153
      %s170 = sphi 0, %s154
      %s180 = sphi 0, %s182
      %s183 = sphi 0, %s180
      %s184 = sphi 0, %s183
      %s200 = sphi 0, %s184
      %s208 = sphi 0, %s210
      %s211 = sphi 0, %s208
      %s212 = sphi 0, %s211
      %s228 = sphi 0, %s212
    $region4: #{tpu_custom_call.1} parent=1 // loop_header_branch
      %29 = sbr.rel (%p27) target = $region8
    $region5: #{tpu_custom_call.1} parent=1 // loop_body
      %s31 = ssub.s32 %s26, 1
      %s32 = ssub.s32 %s26, 2
      %s39 = sadd.s32 1, %s34
      %p40 = scmp.ge.s32.totalorder %s39, 1
      %s41 = scalar_select %p40, 0, %s39
      %s42 = sadd.s32 1, %s33
      %s43 = scalar_select %p40, %s42, %s33
      %p44 = scmp.ge.s32.totalorder %s43, 2
      %s45 = scalar_select %p44, 0, %s43
      %s47 = sadd.s32 %s46, 1
      %p50 = scmp.eq.s32.totalorder %s26, 1
      %p51 = scmp.ne.s32.totalorder %s46, %s48
      %p52 = scmp.eq.s32.totalorder %s26, 0
      %p53 = por %p51, %p52
      %p54 = scmp.ne.s32.totalorder %s46, %s48
      %p55 = scmp.eq.s32.totalorder %s31, 1
      %p56 = por %p54, %p55
      %p57 = scmp.ne.s32.totalorder %s48, %s49
      %p58 = scmp.eq.s32.totalorder %s31, 0
      %p59 = por %p57, %p58
      %p60 = scmp.ne.s32.totalorder %s48, %s49
      %p61 = scmp.eq.s32.totalorder %s32, 1
      %p62 = por %p60, %p61
      %p64 = scmp.ne.s32.totalorder %s49, %s63
      %p65 = scmp.eq.s32.totalorder %s32, 0
      %p66 = por %p64, %p65
      %s68 = sadd.s32 %s67, 1
      %p71 = scmp.eq.s32.totalorder %s26, 1
      %p72 = scmp.ne.s32.totalorder %s67, %s69
      %p73 = scmp.eq.s32.totalorder %s26, 0
      %p74 = por %p72, %p73
      %p75 = scmp.ne.s32.totalorder %s67, %s69
      %p76 = scmp.eq.s32.totalorder %s31, 1
      %p77 = por %p75, %p76
      %p78 = scmp.ne.s32.totalorder %s69, %s70
      %p79 = scmp.eq.s32.totalorder %s31, 0
      %p80 = por %p78, %p79
      %p81 = scmp.ne.s32.totalorder %s69, %s70
      %p82 = scmp.eq.s32.totalorder %s32, 1
      %p83 = por %p81, %p82
      %p85 = scmp.ne.s32.totalorder %s70, %s84
      %p86 = scmp.eq.s32.totalorder %s32, 0
      %p87 = por %p85, %p86
      %s88 = ssub.s32 %s33, %s45
      %s89 = ssub.s32 %s34, %s41
      %s90 = sor.u32 %s88, %s89
      %p91 = scmp.eq.s32.totalorder %s90, 0
      %s93 = sadd.s32 %s92, 1
      %s94 = scalar_select %p91, %s92, %s93
      %p97 = pneg %p91
      %p98 = scmp.eq.s32.totalorder %s26, 1
      %p99 = por %p97, %p98
      %p100 = scmp.ne.s32.totalorder %s92, %s95
      %p101 = scmp.eq.s32.totalorder %s26, 0
      %p102 = por %p100, %p101
      %p103 = scmp.ne.s32.totalorder %s92, %s95
      %p104 = scmp.eq.s32.totalorder %s31, 1
      %p105 = por %p103, %p104
      %p106 = scmp.ne.s32.totalorder %s95, %s96
      %p107 = scmp.eq.s32.totalorder %s31, 0
      %p108 = por %p106, %p107
      %p109 = scmp.ne.s32.totalorder %s95, %s96
      %p110 = scmp.eq.s32.totalorder %s32, 1
      %p111 = por %p109, %p110
      %p113 = scmp.ne.s32.totalorder %s96, %s112
      %p114 = scmp.eq.s32.totalorder %s32, 0
      %p115 = por %p113, %p114
      %s116 = sadd.s32 %s34, 1
      %s117 = sadd.s32 %s41, 1
      %s118 = ssub.s32 %s33, %s45
      %s119 = ssub.s32 %s116, %s117
      %s120 = sor.u32 %s118, %s119
      %p121 = scmp.eq.s32.totalorder %s120, 0
      %s123 = sadd.s32 %s122, 1
      %s124 = scalar_select %p121, %s122, %s123
      %p127 = pneg %p121
      %p128 = scmp.eq.s32.totalorder %s26, 1
      %p129 = por %p127, %p128
      %p130 = scmp.ne.s32.totalorder %s122, %s125
      %p131 = scmp.eq.s32.totalorder %s26, 0
      %p132 = por %p130, %p131
      %p133 = scmp.ne.s32.totalorder %s122, %s125
      %p134 = scmp.eq.s32.totalorder %s31, 1
      %p135 = por %p133, %p134
      %p136 = scmp.ne.s32.totalorder %s125, %s126
      %p137 = scmp.eq.s32.totalorder %s31, 0
      %p138 = por %p136, %p137
      %p139 = scmp.ne.s32.totalorder %s125, %s126
      %p140 = scmp.eq.s32.totalorder %s32, 1
      %p141 = por %p139, %p140
      %p143 = scmp.ne.s32.totalorder %s126, %s142
      %p144 = scmp.eq.s32.totalorder %s32, 0
      %p145 = por %p143, %p144
      %s146 = ssub.s32 %s33, %s45
      %s147 = ssub.s32 %s34, %s41
      %s148 = sor.u32 %s146, %s147
      %p149 = scmp.eq.s32.totalorder %s148, 0
      %s151 = sadd.s32 %s150, 1
      %s152 = scalar_select %p149, %s150, %s151
      %p155 = pneg %p149
      %p156 = scmp.eq.s32.totalorder %s26, 1
      %p157 = por %p155, %p156
      %p158 = scmp.ne.s32.totalorder %s150, %s153
      %p159 = scmp.eq.s32.totalorder %s26, 0
      %p160 = por %p158, %p159
      %p161 = scmp.ne.s32.totalorder %s150, %s153
      %p162 = scmp.eq.s32.totalorder %s31, 1
      %p163 = por %p161, %p162
      %p164 = scmp.ne.s32.totalorder %s153, %s154
      %p165 = scmp.eq.s32.totalorder %s31, 0
      %p166 = por %p164, %p165
      %p167 = scmp.ne.s32.totalorder %s153, %s154
      %p168 = scmp.eq.s32.totalorder %s32, 1
      %p169 = por %p167, %p168
      %p171 = scmp.ne.s32.totalorder %s154, %s170
      %p172 = scmp.eq.s32.totalorder %s32, 0
      %p173 = por %p171, %p172
      %s174 = sadd.s32 %s34, 1
      %s175 = sadd.s32 %s41, 1
      %s176 = ssub.s32 %s33, %s45
      %s177 = ssub.s32 %s174, %s175
      %s178 = sor.u32 %s176, %s177
      %p179 = scmp.eq.s32.totalorder %s178, 0
      %s181 = sadd.s32 %s180, 1
      %s182 = scalar_select %p179, %s180, %s181
      %p185 = pneg %p179
      %p186 = scmp.eq.s32.totalorder %s26, 1
      %p187 = por %p185, %p186
      %p188 = scmp.ne.s32.totalorder %s180, %s183
      %p189 = scmp.eq.s32.totalorder %s26, 0
      %p190 = por %p188, %p189
      %p191 = scmp.ne.s32.totalorder %s180, %s183
      %p192 = scmp.eq.s32.totalorder %s31, 1
      %p193 = por %p191, %p192
      %p194 = scmp.ne.s32.totalorder %s183, %s184
      %p195 = scmp.eq.s32.totalorder %s31, 0
      %p196 = por %p194, %p195
      %p197 = scmp.ne.s32.totalorder %s183, %s184
      %p198 = scmp.eq.s32.totalorder %s32, 1
      %p199 = por %p197, %p198
      %p201 = scmp.ne.s32.totalorder %s184, %s200
      %p202 = scmp.eq.s32.totalorder %s32, 0
      %p203 = por %p201, %p202
      %s204 = ssub.s32 %s33, %s45
      %s205 = ssub.s32 %s34, %s41
      %s206 = sor.u32 %s204, %s205
      %p207 = scmp.eq.s32.totalorder %s206, 0
      %s209 = sadd.s32 %s208, 1
      %s210 = scalar_select %p207, %s208, %s209
      %p213 = pneg %p207
      %p214 = scmp.eq.s32.totalorder %s26, 1
      %p215 = por %p213, %p214
      %p216 = scmp.ne.s32.totalorder %s208, %s211
      %p217 = scmp.eq.s32.totalorder %s26, 0
      %p218 = por %p216, %p217
      %p219 = scmp.ne.s32.totalorder %s208, %s211
      %p220 = scmp.eq.s32.totalorder %s31, 1
      %p221 = por %p219, %p220
      %p222 = scmp.ne.s32.totalorder %s211, %s212
      %p223 = scmp.eq.s32.totalorder %s31, 0
      %p224 = por %p222, %p223
      %p225 = scmp.ne.s32.totalorder %s211, %s212
      %p226 = scmp.eq.s32.totalorder %s32, 1
      %p227 = por %p225, %p226
      %p229 = scmp.ne.s32.totalorder %s212, %s228
      %p230 = scmp.eq.s32.totalorder %s32, 0
      %p231 = por %p229, %p230
      %p232 = scmp.le.s32.totalorder 1, %s26
      %p233 = scmp.lt.s32.totalorder %s26, 3
      %p234 = pnand %p232, %p233
      %p235 = pneg %p234
      // Predicated region
      $region9: #{tpu_custom_call.1} parent=5 // pred_check
        _
      $region10: #{tpu_custom_call.1} parent=5 // pred_check_branch
        %237 = sbr.rel (%p234) target = $region12
      $region11: #{tpu_custom_call.1} parent=5 // pred_region
        %s238 = ssub.s32 %s26, 1
        // Predicated region
        $region13: #{tpu_custom_call.1} parent=11 // pred_check
          %p239 = pneg %p59
        $region14: #{tpu_custom_call.1} parent=11 // pred_check_branch
          %241 = sbr.rel (%p239) target = $region16
        $region15: #{tpu_custom_call.1} parent=11 // pred_region
          %243 = vsyncadd [#allocation5], 0
          %s245 = sshll.u32 %s0, 4
          %s246 = int_to_ptr.vmem [resolvable:$true] %s245
          %248 = dma.vmem_to_smem %s246, 64, [#allocation2], [#allocation5]
        $region16: #{tpu_custom_call.1} parent=11 // pred_fallthru
          _
        // Predicated region
        $region17: #{tpu_custom_call.1} parent=11 // pred_check
          %p249 = pneg %p80
        $region18: #{tpu_custom_call.1} parent=11 // pred_check_branch
          %251 = sbr.rel (%p249) target = $region20
        $region19: #{tpu_custom_call.1} parent=11 // pred_region
          %253 = vsyncadd [#allocation7], 0
          %s255 = sshll.u32 %s1, 4
          %s256 = int_to_ptr.vmem [resolvable:$true] %s255
          %258 = dma.vmem_to_smem %s256, 64, [#allocation6], [#allocation7]
        $region20: #{tpu_custom_call.1} parent=11 // pred_fallthru
          _
      $region12: #{tpu_custom_call.1} parent=5 // pred_fallthru
        _
      %p259 = scmp.lt.s32.totalorder %s26, 2
      // Predicated region
      $region21: #{tpu_custom_call.1} parent=5 // pred_check
        %p260 = pneg %p259
      $region22: #{tpu_custom_call.1} parent=5 // pred_check_branch
        %262 = sbr.rel (%p260) target = $region24
      $region23: #{tpu_custom_call.1} parent=5 // pred_region
        // Predicated region
        $region25: #{tpu_custom_call.1} parent=23 // pred_check
          %p263 = pneg %p102
        $region26: #{tpu_custom_call.1} parent=23 // pred_check_branch
          %265 = sbr.rel (%p263) target = $region28
        $region27: #{tpu_custom_call.1} parent=23 // pred_region
          %s266 = sand.u32 %s92, 1
          %s267 = scalar_lea.sflag [#allocation3], %s266
          %s268 = sand.u32 %s92, 1
          %s269 = smul.addr %s268, 8
          %s270 = scalar_lea.vmem [#allocation8], %s269
          %272 = vsyncadd %s267, 0
          %s273 = smul.addr %s33, 2
          %s274 = sadd.s32 %s34, %s273
          %s275 = smul.addr %s274, 8
          %s276 = scalar_lea.hbm %s2, %s275
          %s278 = sshll.u32 %s276, 4
          %s279 = int_to_ptr.hbm [resolvable:$true] %s278
          %s280 = sshll.u32 %s270, 4
          %s281 = int_to_ptr.vmem [resolvable:$true] %s280
          %283 = dma.hbm_to_vmem [thread:$0]  %s279, 128, %s281, %s267
        $region28: #{tpu_custom_call.1} parent=23 // pred_fallthru
          _
        // Predicated region
        $region29: #{tpu_custom_call.1} parent=23 // pred_check
          %p284 = pneg %p132
        $region30: #{tpu_custom_call.1} parent=23 // pred_check_branch
          %286 = sbr.rel (%p284) target = $region32
        $region31: #{tpu_custom_call.1} parent=23 // pred_region
          %s287 = sand.u32 %s26, 1
          %s288 = scalar_lea.sflag [#allocation10], %s287
          %s289 = sand.u32 %s122, 1
          %s290 = smul.addr %s289, 8
          %s291 = scalar_lea.vmem [#allocation9], %s290
          %s292 = sadd.s32 %s34, 1
          %294 = vsyncadd %s288, 0
          %s295 = smul.addr %s33, 2
          %s296 = sadd.s32 %s292, %s295
          %s297 = smul.addr %s296, 8
          %s298 = scalar_lea.hbm %s3, %s297
          %s300 = sshll.u32 %s298, 4
          %s301 = int_to_ptr.hbm [resolvable:$true] %s300
          %s302 = sshll.u32 %s291, 4
          %s303 = int_to_ptr.vmem [resolvable:$true] %s302
          %305 = dma.hbm_to_vmem [thread:$0]  %s301, 128, %s303, %s288
        $region32: #{tpu_custom_call.1} parent=23 // pred_fallthru
          _
        // Predicated region
        $region33: #{tpu_custom_call.1} parent=23 // pred_check
          %p306 = pneg %p160
        $region34: #{tpu_custom_call.1} parent=23 // pred_check_branch
          %308 = sbr.rel (%p306) target = $region36
        $region35: #{tpu_custom_call.1} parent=23 // pred_region
          %s309 = sand.u32 %s26, 1
          %s310 = scalar_lea.sflag [#allocation10], %s309
          %s311 = sand.u32 %s150, 1
          %s312 = smul.addr %s311, 8
          %s313 = scalar_lea.vmem [#allocation11], %s312
          %315 = vsyncadd %s310, 0
          %s316 = smul.addr %s33, 2
          %s317 = sadd.s32 %s34, %s316
          %s318 = smul.addr %s317, 8
          %s319 = scalar_lea.hbm %s4, %s318
          %s321 = sshll.u32 %s319, 4
          %s322 = int_to_ptr.hbm [resolvable:$true] %s321
          %s323 = sshll.u32 %s313, 4
          %s324 = int_to_ptr.vmem [resolvable:$true] %s323
          %326 = dma.hbm_to_vmem [thread:$0]  %s322, 128, %s324, %s310
        $region36: #{tpu_custom_call.1} parent=23 // pred_fallthru
          _
        // Predicated region
        $region37: #{tpu_custom_call.1} parent=23 // pred_check
          %p327 = pneg %p190
        $region38: #{tpu_custom_call.1} parent=23 // pred_check_branch
          %329 = sbr.rel (%p327) target = $region40
        $region39: #{tpu_custom_call.1} parent=23 // pred_region
          %s330 = sand.u32 %s180, 1
          %s331 = scalar_lea.sflag [#allocation13], %s330
          %s332 = sand.u32 %s180, 1
          %s333 = smul.addr %s332, 8
          %s334 = scalar_lea.vmem [#allocation12], %s333
          %s335 = sadd.s32 %s34, 1
          %337 = vsyncadd %s331, 0
          %s338 = smul.addr %s33, 2
          %s339 = sadd.s32 %s335, %s338
          %s340 = smul.addr %s339, 8
          %s341 = scalar_lea.hbm %s5, %s340
          %s343 = sshll.u32 %s341, 4
          %s344 = int_to_ptr.hbm [resolvable:$true] %s343
          %s345 = sshll.u32 %s334, 4
          %s346 = int_to_ptr.vmem [resolvable:$true] %s345
          %348 = dma.hbm_to_vmem [thread:$0]  %s344, 128, %s346, %s331
        $region40: #{tpu_custom_call.1} parent=23 // pred_fallthru
          _
      $region24: #{tpu_custom_call.1} parent=5 // pred_fallthru
        _
      %p349 = scmp.le.s32.totalorder 1, %s26
      %p350 = scmp.lt.s32.totalorder %s26, 3
      %p351 = pnand %p349, %p350
      %p352 = pneg %p351
      // Predicated region
      $region41: #{tpu_custom_call.1} parent=5 // pred_check
        _
      $region42: #{tpu_custom_call.1} parent=5 // pred_check_branch
        %354 = sbr.rel (%p351) target = $region44
      $region43: #{tpu_custom_call.1} parent=5 // pred_region
        %s355 = ssub.s32 %s26, 1
        // Predicated region
        $region45: #{tpu_custom_call.1} parent=43 // pred_check
          %p356 = pneg %p59
        $region46: #{tpu_custom_call.1} parent=43 // pred_check_branch
          %358 = sbr.rel (%p356) target = $region48
        $region47: #{tpu_custom_call.1} parent=43 // pred_region
          %360 = dma.done [#allocation5], 64
        $region48: #{tpu_custom_call.1} parent=43 // pred_fallthru
          _
        // Predicated region
        $region49: #{tpu_custom_call.1} parent=43 // pred_check
          %p361 = pneg %p80
        $region50: #{tpu_custom_call.1} parent=43 // pred_check_branch
          %363 = sbr.rel (%p361) target = $region52
        $region51: #{tpu_custom_call.1} parent=43 // pred_region
          %365 = dma.done [#allocation7], 64
        $region52: #{tpu_custom_call.1} parent=43 // pred_fallthru
          _
        %s366 = sand.u32 %s95, 1
        %s367 = scalar_lea.sflag [#allocation3], %s366
        %s368 = sand.u32 %s95, 1
        %s369 = smul.addr %s368, 8
        %s370 = scalar_lea.vmem [#allocation8], %s369
        // Predicated region
        $region53: #{tpu_custom_call.1} parent=43 // pred_check
          %p371 = pneg %p108
        $region54: #{tpu_custom_call.1} parent=43 // pred_check_branch
          %373 = sbr.rel (%p371) target = $region56
        $region55: #{tpu_custom_call.1} parent=43 // pred_region
          %375 = dma.done %s367, 128
        $region56: #{tpu_custom_call.1} parent=43 // pred_fallthru
          _
        %s376 = sand.u32 %s31, 1
        %s377 = scalar_lea.sflag [#allocation10], %s376
        %s378 = sand.u32 %s125, 1
        %s379 = smul.addr %s378, 8
        %s380 = scalar_lea.vmem [#allocation9], %s379
        // Predicated region
        $region57: #{tpu_custom_call.1} parent=43 // pred_check
          %p381 = pneg %p138
        $region58: #{tpu_custom_call.1} parent=43 // pred_check_branch
          %383 = sbr.rel (%p381) target = $region60
        $region59: #{tpu_custom_call.1} parent=43 // pred_region
          %385 = dma.done %s377, 128
        $region60: #{tpu_custom_call.1} parent=43 // pred_fallthru
          _
        %s386 = sand.u32 %s31, 1
        %s387 = scalar_lea.sflag [#allocation10], %s386
        %s388 = sand.u32 %s153, 1
        %s389 = smul.addr %s388, 8
        %s390 = scalar_lea.vmem [#allocation11], %s389
        // Predicated region
        $region61: #{tpu_custom_call.1} parent=43 // pred_check
          %p391 = pneg %p166
        $region62: #{tpu_custom_call.1} parent=43 // pred_check_branch
          %393 = sbr.rel (%p391) target = $region64
        $region63: #{tpu_custom_call.1} parent=43 // pred_region
          %395 = dma.done %s387, 128
        $region64: #{tpu_custom_call.1} parent=43 // pred_fallthru
          _
        %s396 = sand.u32 %s183, 1
        %s397 = scalar_lea.sflag [#allocation13], %s396
        %s398 = sand.u32 %s183, 1
        %s399 = smul.addr %s398, 8
        %s400 = scalar_lea.vmem [#allocation12], %s399
        // Predicated region
        $region65: #{tpu_custom_call.1} parent=43 // pred_check
          %p401 = pneg %p196
        $region66: #{tpu_custom_call.1} parent=43 // pred_check_branch
          %403 = sbr.rel (%p401) target = $region68
        $region67: #{tpu_custom_call.1} parent=43 // pred_region
          %405 = dma.done %s397, 128
        $region68: #{tpu_custom_call.1} parent=43 // pred_fallthru
          _
        %406 = sfence
        %p407 = pneg %p59
        %p408 = pneg %p56
        %p409 = pneg %p80
        %p410 = pneg %p77
        %s411 = sand.u32 %s95, 1
        %s412 = scalar_lea.sflag [#allocation3], %s411
        %s413 = sand.u32 %s95, 1
        %s414 = smul.addr %s413, 8
        %s415 = scalar_lea.vmem [#allocation8], %s414
        %p416 = pneg %p108
        %p417 = pneg %p105
        %s418 = sand.u32 %s31, 1
        %s419 = scalar_lea.sflag [#allocation10], %s418
        %s420 = sand.u32 %s125, 1
        %s421 = smul.addr %s420, 8
        %s422 = scalar_lea.vmem [#allocation9], %s421
        %p423 = pneg %p138
        %p424 = pneg %p135
        %s425 = sand.u32 %s31, 1
        %s426 = scalar_lea.sflag [#allocation10], %s425
        %s427 = sand.u32 %s153, 1
        %s428 = smul.addr %s427, 8
        %s429 = scalar_lea.vmem [#allocation11], %s428
        %p430 = pneg %p166
        %p431 = pneg %p163
        %s432 = sand.u32 %s183, 1
        %s433 = scalar_lea.sflag [#allocation13], %s432
        %s434 = sand.u32 %s183, 1
        %s435 = smul.addr %s434, 8
        %s436 = scalar_lea.vmem [#allocation12], %s435
        %p437 = pneg %p196
        %p438 = pneg %p193
        %p439 = pneg %p224
        %p440 = pneg %p221
        %s441 = sand.u32 %s211, 1
        %s442 = scalar_lea.sflag [#allocation4], %s441
        %s443 = sand.u32 %s211, 1
        %s444 = smul.addr %s443, 8
        %s445 = scalar_lea.vmem [#allocation14], %s444
        %s446 = sadd.s32 %s36, 1
        %s447 = sadd.s32 %s36, 1
        %v448 = vld [vmem:[%s370] sm:$0xff]
        %v449 = vld [vmem:[%s380] sm:$0xff]
        %v450 = vld [vmem:[%s390] sm:$0xff]
        %v451 = vld [vmem:[%s400] sm:$0xff]
        %v452 = vlaneseq
        %v453 = vand.u32 %v452, 127
        %s454 = sld [smem:[#allocation2]]
        %s455 = sld [smem:[#allocation2 + $0x1]]
        %s456 = sld [smem:[#allocation6]]
        %s457 = sld [smem:[#allocation6 + $0x1]]
        %vm458 = vcmp.lt.s32.totalorder %v453, 127
        %459 = vrot.lane.b32.xlu0 %v448, 127
        %v460 = vpop.permute.xlu0 %459
        %461 = vrot.lane.b32.xlu0 %v449, 127
        %v462 = vpop.permute.xlu0 %461
        %463 = vrot.lane.b32.xlu0 %v450, 127
        %v464 = vpop.permute.xlu0 %463
        %465 = vrot.lane.b32.xlu0 %v451, 127
        %v466 = vpop.permute.xlu0 %465
        %v467 = vrot.slane %v460, 1
        %v468 = vrot.slane %v462, 1
        %v469 = vlaneseq
        %v470 = vshrl.u32 %v469, 7
        %vm471 = vcmp.lt.s32.totalorder %v470, 7
        %v472 = vsel %vm471, %v467, %v468
        %v473 = vsel %vm471, %v468, %v467
        %v474 = vsel %vm458, %v460, %v472
        %v475 = vsel %vm458, %v462, %v473
        %v476 = vrot.slane %v464, 1
        %v477 = vrot.slane %v466, 1
        %v478 = vsel %vm471, %v476, %v477
        %v479 = vsel %vm471, %v477, %v476
        %v480 = vsel %vm458, %v464, %v478
        %v481 = vsel %vm458, %v466, %v479
        %v482 = vstv %s454
        %v483 = vmul.f32 %v482, %v448
        %v484 = vmul.f32 %v482, %v449
        %v485 = vstv %s455
        %v486 = vmul.f32 %v485, %v474
        %v487 = vmul.f32 %v485, %v475
        %v488 = vadd.f32 %v483, %v486
        %v489 = vadd.f32 %v484, %v487
        %v490 = vstv %s456
        %v491 = vmul.f32 %v490, %v450
        %v492 = vmul.f32 %v490, %v451
        %v493 = vstv %s457
        %v494 = vmul.f32 %v493, %v480
        %v495 = vmul.f32 %v493, %v481
        %v496 = vadd.f32 %v491, %v494
        %v497 = vadd.f32 %v492, %v495
        %v498 = vadd.f32 %v488, %v496
        %v499 = vadd.f32 %v489, %v497
        %v500 = vtanh.pop %v498
        %v501 = vtanh.pop %v499
        %s502 = sld [smem:[#allocation2 + $0x80]]
        %s503 = sld [smem:[#allocation2 + $0x81]]
        %s504 = sld [smem:[#allocation6 + $0x80]]
        %s505 = sld [smem:[#allocation6 + $0x81]]
        %vm506 = vcmp.lt.s32.totalorder %v453, 126
        %507 = vrot.lane.b32.xlu0 %v488, 126
        %v508 = vpop.permute.xlu0 %507
        %509 = vrot.lane.b32.xlu0 %v489, 126
        %v510 = vpop.permute.xlu0 %509
        %511 = vrot.lane.b32.xlu0 %v500, 126
        %v512 = vpop.permute.xlu0 %511
        %513 = vrot.lane.b32.xlu0 %v501, 126
        %v514 = vpop.permute.xlu0 %513
        %v515 = vrot.slane %v508, 1
        %v516 = vrot.slane %v510, 1
        %v517 = vsel %vm471, %v515, %v516
        %v518 = vsel %vm471, %v516, %v515
        %v519 = vsel %vm506, %v508, %v517
        %v520 = vsel %vm506, %v510, %v518
        %v521 = vrot.slane %v512, 1
        %v522 = vrot.slane %v514, 1
        %v523 = vsel %vm471, %v521, %v522
        %v524 = vsel %vm471, %v522, %v521
        %v525 = vsel %vm506, %v512, %v523
        %v526 = vsel %vm506, %v514, %v524
        %v527 = vstv %s502
        %v528 = vmul.f32 %v527, %v488
        %v529 = vmul.f32 %v527, %v489
        %v530 = vstv %s503
        %v531 = vmul.f32 %v530, %v519
        %v532 = vmul.f32 %v530, %v520
        %v533 = vadd.f32 %v528, %v531
        %v534 = vadd.f32 %v529, %v532
        %v535 = vstv %s504
        %v536 = vmul.f32 %v535, %v500
        %v537 = vmul.f32 %v535, %v501
        %v538 = vstv %s505
        %v539 = vmul.f32 %v538, %v525
        %v540 = vmul.f32 %v538, %v526
        %v541 = vadd.f32 %v536, %v539
        %v542 = vadd.f32 %v537, %v540
        %v543 = vadd.f32 %v533, %v541
        %v544 = vadd.f32 %v534, %v542
        %v545 = vtanh.pop %v543
        %v546 = vtanh.pop %v544
        %s547 = sld [smem:[#allocation2 + $0x100]]
        %s548 = sld [smem:[#allocation2 + $0x101]]
        %s549 = sld [smem:[#allocation6 + $0x100]]
        %s550 = sld [smem:[#allocation6 + $0x101]]
        %vm551 = vcmp.lt.s32.totalorder %v453, 124
        %552 = vrot.lane.b32.xlu0 %v533, 124
        %v553 = vpop.permute.xlu0 %552
        %554 = vrot.lane.b32.xlu0 %v534, 124
        %v555 = vpop.permute.xlu0 %554
        %556 = vrot.lane.b32.xlu0 %v545, 124
        %v557 = vpop.permute.xlu0 %556
        %558 = vrot.lane.b32.xlu0 %v546, 124
        %v559 = vpop.permute.xlu0 %558
        %v560 = vrot.slane %v553, 1
        %v561 = vrot.slane %v555, 1
        %v562 = vsel %vm471, %v560, %v561
        %v563 = vsel %vm551, %v553, %v562
        %v564 = vrot.slane %v557, 1
        %v565 = vrot.slane %v559, 1
        %v566 = vsel %vm471, %v564, %v565
        %v567 = vsel %vm551, %v557, %v566
        %v568 = vstv %s547
        %v569 = vmul.f32 %v568, %v533
        %v570 = vstv %s548
        %v571 = vmul.f32 %v570, %v563
        %v572 = vadd.f32 %v569, %v571
        %v573 = vstv %s549
        %v574 = vmul.f32 %v573, %v545
        %v575 = vstv %s550
        %v576 = vmul.f32 %v575, %v567
        %v577 = vadd.f32 %v574, %v576
        %v578 = vadd.f32 %v572, %v577
        %v579 = vtanh.pop %v578
        %580 = vst [vmem:[%s445] sm:$0xff] %v579
        %s581 = sand.u32 %s211, 1
        %s582 = scalar_lea.sflag [#allocation4], %s581
        %s583 = sand.u32 %s211, 1
        %s584 = smul.addr %s583, 8
        %s585 = scalar_lea.vmem [#allocation14], %s584
        // Predicated region
        $region69: #{tpu_custom_call.1} parent=43 // pred_check
          %p586 = pneg %p221
        $region70: #{tpu_custom_call.1} parent=43 // pred_check_branch
          %588 = sbr.rel (%p586) target = $region72
        $region71: #{tpu_custom_call.1} parent=43 // pred_region
          %590 = vsyncadd %s582, 0
          %s591 = sadd.s32 %s36, %s35
          %s592 = smul.addr %s591, 8
          %s593 = scalar_lea.hbm %s6, %s592
          %s595 = sshll.u32 %s585, 4
          %s596 = int_to_ptr.vmem [resolvable:$true] %s595
          %s597 = sshll.u32 %s593, 4
          %s598 = int_to_ptr.hbm [resolvable:$true] %s597
          %600 = dma.vmem_to_hbm [thread:$0]  %s596, 128, %s598, %s582
        $region72: #{tpu_custom_call.1} parent=43 // pred_fallthru
          _
      $region44: #{tpu_custom_call.1} parent=5 // pred_fallthru
        _
      %p601 = scmp.le.s32.totalorder 2, %s26
      // Predicated region
      $region73: #{tpu_custom_call.1} parent=5 // pred_check
        %p602 = pneg %p601
      $region74: #{tpu_custom_call.1} parent=5 // pred_check_branch
        %604 = sbr.rel (%p602) target = $region76
      $region75: #{tpu_custom_call.1} parent=5 // pred_region
        %s605 = ssub.s32 %s26, 2
        // Predicated region
        $region77: #{tpu_custom_call.1} parent=75 // pred_check
          %p606 = pneg %p227
        $region78: #{tpu_custom_call.1} parent=75 // pred_check_branch
          %608 = sbr.rel (%p606) target = $region80
        $region79: #{tpu_custom_call.1} parent=75 // pred_region
          %s609 = sand.u32 %s212, 1
          %s610 = scalar_lea.sflag [#allocation4], %s609
          %s611 = sand.u32 %s212, 1
          %s612 = smul.addr %s611, 8
          %s613 = scalar_lea.vmem [#allocation14], %s612
          %615 = dma.done %s610, 128
        $region80: #{tpu_custom_call.1} parent=75 // pred_fallthru
          _
      $region76: #{tpu_custom_call.1} parent=5 // pred_fallthru
        _
    $region6: #{tpu_custom_call.1} parent=1 // loop_footer
      %s30 = sadd.s32 1, %s26
    $region7: #{tpu_custom_call.1} parent=1 // loop_footer_branch
      %25 = sbr.rel target = $region3
    $region8: #{tpu_custom_call.1} parent=1 // loop_exit
      _
    %616 = vsyncpa [#allocation3], 1
    %s617 = scalar_lea.sflag [#allocation3], 1
    %618 = vsyncpa %s617, 1
    %619 = vsyncpa [#allocation10], 1
    %s620 = scalar_lea.sflag [#allocation10], 1
    %621 = vsyncpa %s620, 1
    %622 = vsyncpa [#allocation13], 1
    %s623 = scalar_lea.sflag [#allocation13], 1
    %624 = vsyncpa %s623, 1
    %625 = vsyncpa [#allocation4], 1
    %s626 = scalar_lea.sflag [#allocation4], 1
    %627 = vsyncpa %s626, 1
    %628 = vsyncpa [#allocation5], 1
    %s629 = scalar_lea.sflag [#allocation5], 1
    %630 = vsyncpa %s629, 1
    %631 = vsyncpa [#allocation7], 1

</llo_original>
